<compile_context>
chip_gen: v6e
topology: v6e:2x2x1
jax: 0.10.0
libtpu: 0.0.40
codegen_flags: <defaults>
</compile_context>

<pallas_src>
import jax
import jax.numpy as jnp
from jax import lax
from jax.experimental import pallas as pl
from jax.experimental.pallas import tpu as pltpu


def _lintrans_kernel(x_ref, wt_ref, bt_ref, ot_ref):
    # zT = Wt @ x^T : (D2, D0) x (tm, D0)^T -> (D2, tm), f32 accumulation.
    # Contraction on the LAST dim of both operands (q @ k^T pattern), so the
    # MXU consumes x in its natural layout and the result is already
    # lane-dense (batch on the lane axis).
    zt = lax.dot_general(
        wt_ref[...], x_ref[...],
        dimension_numbers=(((1,), (1,)), ((), ())),
        preferred_element_type=jnp.float32,
    )
    zt = zt + bt_ref[...]                               # (D2, tm) + (D2, 1)

    # Fused epilogue, per original row == per lane:
    #   scale():     z_std = (z - zmin) / (zmax - zmin)
    #   normalize(): z_std / max(||z_std||_2, 1e-12)
    # The positive per-row (zmax - zmin) factor cancels under the L2 norm.
    zmin = jnp.min(zt, axis=0, keepdims=True)           # (1, tm) sublane reduce
    zc = zt - zmin
    ssq = jnp.sum(zc * zc, axis=0, keepdims=True)       # (1, tm)
    inv_norm = lax.rsqrt(jnp.maximum(ssq, 1e-24))       # EUP rsqrt; eps == 1e-12 on the norm
    ot_ref[...] = (zc * inv_norm).astype(ot_ref.dtype)


def _grid_splits_for_device():
    """2 parallel steps on dual-TensorCore chips (v7x), else 1."""
    try:
        kind = jax.devices()[0].device_kind.lower()
    except Exception:
        return 1
    return 2 if "7" in kind else 1


def lintrans_forward(x, w1, b1, w2, b2, *, num_splits=None, max_tm=4096):
    """x: (N, D0), w1: (D0, D1), b1: (1, D1), w2: (D1, D2), b2: (1, D2)."""
    N, D0 = x.shape
    D2 = w2.shape[1]

    # Fold the two Linear layers (no nonlinearity between them), keeping the
    # folded weight / bias pre-transposed for the lane-dense kernel layout.
    wt = jnp.dot(w2.T, w1.T)                # (D2, D0) == (w1 @ w2)^T
    bt = (jnp.dot(b1, w2) + b2).T           # (D2, 1)

    if num_splits is None:
        num_splits = _grid_splits_for_device()

    # --- tile / grid selection ---
    # grid == 1  -> tm = N exactly (blocks equal full array dims; no alignment
    #               constraints, single fixed per-step overhead).
    # grid  > 1  -> tm multiple of 128 (lane-dense output blocks) and of 8
    #               (x sublane tiling); last block may overrun N (handled).
    if num_splits <= 1:
        tm = min(N, max_tm)
    else:
        tm = -(-N // num_splits)                       # ceil(N / splits)
        tm = min(max_tm, -(-tm // 128) * 128)          # round up to 128, cap
    grid = -(-N // tm)                                 # cdiv
    if grid == 1:
        tm = N
    Np = grid * tm                                     # padded output columns

    cost = pl.CostEstimate(
        flops=2 * N * D0 * D2 + 6 * N * D2,
        transcendentals=N,                             # one rsqrt per row
        bytes_accessed=4 * (N * D0 + D2 * D0 + D2 + Np * D2),
    )

    out_t = pl.pallas_call(
        _lintrans_kernel,
        out_shape=jax.ShapeDtypeStruct((D2, Np), x.dtype),
        grid_spec=pltpu.PrefetchScalarGridSpec(
            num_scalar_prefetch=0,
            grid=(grid,),
            in_specs=[
                pl.BlockSpec((tm, D0), lambda i: (i, 0)),   # x row tile
                pl.BlockSpec((D2, D0), lambda i: (0, 0)),   # folded W^T (whole, constant)
                pl.BlockSpec((D2, 1), lambda i: (0, 0)),    # folded bias^T (constant)
            ],
            out_specs=pl.BlockSpec((D2, tm), lambda i: (0, i)),
        ),
        compiler_params=pltpu.CompilerParams(
            dimension_semantics=("parallel",)),
        cost_estimate=cost,
    )(x, wt, bt)

    # Tiny (D2 x N) slice + transpose back to the module's (N, D2) layout.
    return out_t[:, :N].T


def _reference(x, w1, b1, w2, b2):
    # Mirrors the PyTorch module exactly (two Linears, scale, F.normalize).
    z = x @ w1 + b1
    z = z @ w2 + b2
    zmax = jnp.max(z, axis=1, keepdims=True)
    zmin = jnp.min(z, axis=1, keepdims=True)
    z = (z - zmin) / (zmax - zmin)
    denom = jnp.maximum(jnp.linalg.norm(z, axis=1, keepdims=True), 1e-12)
    return z / denom


if __name__ == "__main__":
    # LinTrans(layers=2, dims=[32, 64, 16]); N=512 gives a single full-array
    # step on v5e/v6e and two 256-row parallel steps on v7x.
    N, dims = 512, [32, 64, 16]
    key = jax.random.PRNGKey(0)
    kx, kw1, kb1, kw2, kb2 = jax.random.split(key, 5)

    x = jax.random.normal(kx, (N, dims[0]), dtype=jnp.float32)
    # deterministic synthetic Linear parameters, stored as (in, out)
    w1 = jax.random.normal(kw1, (dims[0], dims[1]), jnp.float32) * (1.0 / dims[0] ** 0.5)
    b1 = jax.random.normal(kb1, (1, dims[1]), jnp.float32) * 0.1
    w2 = jax.random.normal(kw2, (dims[1], dims[2]), jnp.float32) * (1.0 / dims[1] ** 0.5)
    b2 = jax.random.normal(kb2, (1, dims[2]), jnp.float32) * 0.1

    out = lintrans_forward(x, w1, b1, w2, b2)
    out = jax.block_until_ready(out)

    ref = _reference(x, w1, b1, w2, b2)
    assert out.shape == (N, dims[-1])
    assert jnp.allclose(out, ref, atol=1e-5, rtol=1e-5), "mismatch vs JAX reference"
    print("KERNEL_OK")
</pallas_src>

<mosaic_0001>
module attributes {stable_mosaic.version = 11 : i64} {
  func.func @_lintrans_kernel(%arg0: i32, %arg1: memref<512x32xf32, #tpu.memory_space<vmem>>, %arg2: memref<16x32xf32, #tpu.memory_space<vmem>>, %arg3: memref<16x1xf32, #tpu.memory_space<vmem>>, %arg4: memref<16x512xf32, #tpu.memory_space<vmem>>) attributes {dimension_semantics = [#tpu.dimension_semantics<parallel>], iteration_bounds = array<i64: 1>, scalar_prefetch = 0 : i64, scratch_operands = 0 : i64, tpu.core_type = #tpu.core_type<tc>, window_params = [{transform_indices = @transform_0, window_bounds = array<i64: 512, 32>}, {pipeline_mode = #tpu.pipeline_mode<synchronous>, transform_indices = @transform_1, window_bounds = array<i64: 16, 32>}, {pipeline_mode = #tpu.pipeline_mode<synchronous>, transform_indices = @transform_2, window_bounds = array<i64: 16, 1>}, {transform_indices = @transform_3, window_bounds = array<i64: 16, 512>}]} {
    %c0 = arith.constant 0 : index
    %c0_0 = arith.constant 0 : index
    %0 = vector.load %arg2[%c0, %c0_0] : memref<16x32xf32, #tpu.memory_space<vmem>>, vector<16x32xf32>
    %c0_1 = arith.constant 0 : index
    %c0_2 = arith.constant 0 : index
    %1 = vector.load %arg1[%c0_1, %c0_2] : memref<512x32xf32, #tpu.memory_space<vmem>>, vector<512x32xf32>
    %cst = arith.constant dense<0.000000e+00> : vector<16x512xf32>
    %2 = tpu.matmul %0, %1, %cst {dimension_numbers = #tpu.dot_dimension_numbers<[1], [1], [0], [0], [0, 0, 1, 0], [], []>} : vector<16x32xf32>, vector<512x32xf32>, vector<16x512xf32> -> vector<16x512xf32>
    %c0_3 = arith.constant 0 : index
    %c0_4 = arith.constant 0 : index
    %3 = vector.load %arg3[%c0_3, %c0_4] : memref<16x1xf32, #tpu.memory_space<vmem>>, vector<16x1xf32>
    %4 = vector.broadcast %3 : vector<16x1xf32> to vector<16x512xf32>
    %5 = arith.addf %2, %4 : vector<16x512xf32>
    %cst_5 = arith.constant dense<0x7F800000> : vector<512xf32>
    %6 = vector.multi_reduction <minimumf>, %5, %cst_5 [0] : vector<16x512xf32> to vector<512xf32>
    %7 = vector.shape_cast %6 : vector<512xf32> to vector<1x512xf32>
    %8 = vector.broadcast %7 : vector<1x512xf32> to vector<16x512xf32>
    %9 = arith.subf %5, %8 : vector<16x512xf32>
    %10 = arith.mulf %9, %9 : vector<16x512xf32>
    %cst_6 = arith.constant dense<0.000000e+00> : vector<512xf32>
    %11 = vector.multi_reduction <add>, %10, %cst_6 [0] : vector<16x512xf32> to vector<512xf32>
    %12 = vector.shape_cast %11 : vector<512xf32> to vector<1x512xf32>
    %cst_7 = arith.constant 1.000000e-24 : f32
    %13 = vector.broadcast %cst_7 : f32 to vector<1x512xf32>
    %14 = arith.maximumf %12, %13 : vector<1x512xf32>
    %15 = math.rsqrt %14 : vector<1x512xf32>
    %16 = vector.broadcast %15 : vector<1x512xf32> to vector<16x512xf32>
    %17 = arith.mulf %9, %16 : vector<16x512xf32>
    %c0_8 = arith.constant 0 : index
    %c0_9 = arith.constant 0 : index
    %18 = vector.load %arg4[%c0_8, %c0_9] : memref<16x512xf32, #tpu.memory_space<vmem>>, vector<16x512xf32>
    tpu.vector_store %arg4[%c0_8, %c0_9], %17 {strides = array<i32>} : memref<16x512xf32, #tpu.memory_space<vmem>>, vector<16x512xf32>,
    return
  }
  func.func @transform_0(%arg0: i32) -> (i32, i32) {
    %c0_i32 = arith.constant 0 : i32
    %c0_i32_0 = arith.constant 0 : i32
    return %arg0, %c0_i32 : i32, i32
  }
  func.func @transform_1(%arg0: i32) -> (i32, i32) {
    %c0_i32 = arith.constant 0 : i32
    %c0_i32_0 = arith.constant 0 : i32
    %c0_i32_1 = arith.constant 0 : i32
    return %c0_i32, %c0_i32_0 : i32, i32
  }
  func.func @transform_2(%arg0: i32) -> (i32, i32) {
    %c0_i32 = arith.constant 0 : i32
    %c0_i32_0 = arith.constant 0 : i32
    %c0_i32_1 = arith.constant 0 : i32
    return %c0_i32, %c0_i32_0 : i32, i32
  }
  func.func @transform_3(%arg0: i32) -> (i32, i32) {
    %c0_i32 = arith.constant 0 : i32
    %c0_i32_0 = arith.constant 0 : i32
    return %c0_i32, %arg0 : i32, i32
  }
}

</mosaic_0001>

<llo_original>
// kernel: tpu_custom_call.1
$region0: #{tpu_custom_call.1}
  #allocation0 [shape = 'u32[]', space=smem, size = 0x4, offset = 0x4, fixed_abs, tag = 'smem constant byte address 0x4 - core index']
  #allocation1 [shape = 'u32[144,128]{1,0:T(1,128)}', space=vmem, size = 0x12000, scoped, tag = 'internal scratch']
  %s0 = inlined_call_operand.vmem [shape: f32[512,32], index: 0, kind: input, shape index: {}]
  %s1 = inlined_call_operand.vmem [shape: f32[16,32], index: 1, kind: input, shape index: {}]
  %s2 = inlined_call_operand.vmem [shape: f32[16,1], index: 2, kind: input, shape index: {}]
  %s3 = inlined_call_operand.hbm [shape: f32[16,512], index: 3, kind: output, shape index: {}]
  %s4 = sld [smem:[#allocation0]]
  $region22: #{tpu_custom_call.1} parent=0
    _
  %s6 = ssub.s32 1, %s4
  %s7 = scalar_select 0, %s6, %s4
  $region1: #{tpu_custom_call.1} parent=0
    #allocation2 [shape = 'u8[32768]{0}', space=vmem, size = 0x8000, scoped, tag = 'output window, operand 0, single buffered']
    #allocation3 [shape = 's32[1]{0}', space=sflag, size = 0x4, scoped, tag = 'scoped memory for tpu_custom_call.1']
    %8 = vsyncpa [#allocation3], 0
    // Predicated region
    $region2: #{tpu_custom_call.1} parent=1 // pred_check
      _
    $region3: #{tpu_custom_call.1} parent=1 // pred_check_branch
      %10 = sbr.rel (0) target = $region5
    $region4: #{tpu_custom_call.1} parent=1 // pred_region
      _
    $region5: #{tpu_custom_call.1} parent=1 // pred_fallthru
      _
    // Predicated region
    $region6: #{tpu_custom_call.1} parent=1 // pred_check
      _
    $region7: #{tpu_custom_call.1} parent=1 // pred_check_branch
      %12 = sbr.rel (0) target = $region9
    $region8: #{tpu_custom_call.1} parent=1 // pred_region
      _
    $region9: #{tpu_custom_call.1} parent=1 // pred_fallthru
      _
    // Predicated region
    $region10: #{tpu_custom_call.1} parent=1 // pred_check
      _
    $region11: #{tpu_custom_call.1} parent=1 // pred_check_branch
      %14 = sbr.rel (0) target = $region13
    $region12: #{tpu_custom_call.1} parent=1 // pred_region
      _
    $region13: #{tpu_custom_call.1} parent=1 // pred_fallthru
      _
    %v15 = vld [vmem:[%s1] sm:$0xff]
    %v16 = vld [vmem:[%s1 + $0x8] sm:$0xff]
    %v17 = vld [vmem:[%s0] sm:$0xff]
    %v18 = vld [vmem:[%s0 + $0x8] sm:$0xff]
    %v19 = vld [vmem:[%s0 + $0x10] sm:$0xff]
    %v20 = vld [vmem:[%s0 + $0x18] sm:$0xff]
    %v21 = vld [vmem:[%s0 + $0x20] sm:$0xff]
    %v22 = vld [vmem:[%s0 + $0x28] sm:$0xff]
    %v23 = vld [vmem:[%s0 + $0x30] sm:$0xff]
    %v24 = vld [vmem:[%s0 + $0x38] sm:$0xff]
    %v25 = vld [vmem:[%s0 + $0x40] sm:$0xff]
    %v26 = vld [vmem:[%s0 + $0x48] sm:$0xff]
    %v27 = vld [vmem:[%s0 + $0x50] sm:$0xff]
    %v28 = vld [vmem:[%s0 + $0x58] sm:$0xff]
    %v29 = vld [vmem:[%s0 + $0x60] sm:$0xff]
    %v30 = vld [vmem:[%s0 + $0x68] sm:$0xff]
    %v31 = vld [vmem:[%s0 + $0x70] sm:$0xff]
    %v32 = vld [vmem:[%s0 + $0x78] sm:$0xff]
    %v33 = vld [vmem:[%s0 + $0x80] sm:$0xff]
    %v34 = vld [vmem:[%s0 + $0x88] sm:$0xff]
    %v35 = vld [vmem:[%s0 + $0x90] sm:$0xff]
    %v36 = vld [vmem:[%s0 + $0x98] sm:$0xff]
    %v37 = vld [vmem:[%s0 + $0xa0] sm:$0xff]
    %v38 = vld [vmem:[%s0 + $0xa8] sm:$0xff]
    %v39 = vld [vmem:[%s0 + $0xb0] sm:$0xff]
    %v40 = vld [vmem:[%s0 + $0xb8] sm:$0xff]
    %v41 = vld [vmem:[%s0 + $0xc0] sm:$0xff]
    %v42 = vld [vmem:[%s0 + $0xc8] sm:$0xff]
    %v43 = vld [vmem:[%s0 + $0xd0] sm:$0xff]
    %v44 = vld [vmem:[%s0 + $0xd8] sm:$0xff]
    %v45 = vld [vmem:[%s0 + $0xe0] sm:$0xff]
    %v46 = vld [vmem:[%s0 + $0xe8] sm:$0xff]
    %v47 = vld [vmem:[%s0 + $0xf0] sm:$0xff]
    %v48 = vld [vmem:[%s0 + $0xf8] sm:$0xff]
    %v49 = vld [vmem:[%s0 + $0x100] sm:$0xff]
    %v50 = vld [vmem:[%s0 + $0x108] sm:$0xff]
    %v51 = vld [vmem:[%s0 + $0x110] sm:$0xff]
    %v52 = vld [vmem:[%s0 + $0x118] sm:$0xff]
    %v53 = vld [vmem:[%s0 + $0x120] sm:$0xff]
    %v54 = vld [vmem:[%s0 + $0x128] sm:$0xff]
    %v55 = vld [vmem:[%s0 + $0x130] sm:$0xff]
    %v56 = vld [vmem:[%s0 + $0x138] sm:$0xff]
    %v57 = vld [vmem:[%s0 + $0x140] sm:$0xff]
    %v58 = vld [vmem:[%s0 + $0x148] sm:$0xff]
    %v59 = vld [vmem:[%s0 + $0x150] sm:$0xff]
    %v60 = vld [vmem:[%s0 + $0x158] sm:$0xff]
    %v61 = vld [vmem:[%s0 + $0x160] sm:$0xff]
    %v62 = vld [vmem:[%s0 + $0x168] sm:$0xff]
    %v63 = vld [vmem:[%s0 + $0x170] sm:$0xff]
    %v64 = vld [vmem:[%s0 + $0x178] sm:$0xff]
    %v65 = vld [vmem:[%s0 + $0x180] sm:$0xff]
    %v66 = vld [vmem:[%s0 + $0x188] sm:$0xff]
    %v67 = vld [vmem:[%s0 + $0x190] sm:$0xff]
    %v68 = vld [vmem:[%s0 + $0x198] sm:$0xff]
    %v69 = vld [vmem:[%s0 + $0x1a0] sm:$0xff]
    %v70 = vld [vmem:[%s0 + $0x1a8] sm:$0xff]
    %v71 = vld [vmem:[%s0 + $0x1b0] sm:$0xff]
    %v72 = vld [vmem:[%s0 + $0x1b8] sm:$0xff]
    %v73 = vld [vmem:[%s0 + $0x1c0] sm:$0xff]
    %v74 = vld [vmem:[%s0 + $0x1c8] sm:$0xff]
    %v75 = vld [vmem:[%s0 + $0x1d0] sm:$0xff]
    %v76 = vld [vmem:[%s0 + $0x1d8] sm:$0xff]
    %v77 = vld [vmem:[%s0 + $0x1e0] sm:$0xff]
    %v78 = vld [vmem:[%s0 + $0x1e8] sm:$0xff]
    %v79 = vld [vmem:[%s0 + $0x1f0] sm:$0xff]
    %v80 = vld [vmem:[%s0 + $0x1f8] sm:$0xff]
    %v81 = vld [vmem:[%s2] sm:$0xff]
    %v82 = vld [vmem:[%s2 + $0x8] sm:$0xff]
    %84 = vset.pattern.permute.xlu0 0
    %85 = vperm.xlu0 %84, %v81
    %v86 = vpop.permute.xlu0 %85
    %89 = vset.pattern.permute.xlu0 0
    %90 = vperm.xlu0 %89, %v82
    %v91 = vpop.permute.xlu0 %90
    %vm93 = vcmask 261120
    %v95 = vsel %vm93, %v15, 0
    %v98 = vsel %vm93, %v16, 0
    %v101 = vsel %vm93, %v17, 0
    %v104 = vsel %vm93, %v18, 0
    %v107 = vsel %vm93, %v19, 0
    %v110 = vsel %vm93, %v20, 0
    %v113 = vsel %vm93, %v21, 0
    %v116 = vsel %vm93, %v22, 0
    %v119 = vsel %vm93, %v23, 0
    %v122 = vsel %vm93, %v24, 0
    %v125 = vsel %vm93, %v25, 0
    %v128 = vsel %vm93, %v26, 0
    %v131 = vsel %vm93, %v27, 0
    %v134 = vsel %vm93, %v28, 0
    %v137 = vsel %vm93, %v29, 0
    %v140 = vsel %vm93, %v30, 0
    %v143 = vsel %vm93, %v31, 0
    %v146 = vsel %vm93, %v32, 0
    %v149 = vsel %vm93, %v33, 0
    %v152 = vsel %vm93, %v34, 0
    %v155 = vsel %vm93, %v35, 0
    %v158 = vsel %vm93, %v36, 0
    %v161 = vsel %vm93, %v37, 0
    %v164 = vsel %vm93, %v38, 0
    %v167 = vsel %vm93, %v39, 0
    %v170 = vsel %vm93, %v40, 0
    %v173 = vsel %vm93, %v41, 0
    %v176 = vsel %vm93, %v42, 0
    %v179 = vsel %vm93, %v43, 0
    %v182 = vsel %vm93, %v44, 0
    %v185 = vsel %vm93, %v45, 0
    %v188 = vsel %vm93, %v46, 0
    %v191 = vsel %vm93, %v47, 0
    %v194 = vsel %vm93, %v48, 0
    %v197 = vsel %vm93, %v49, 0
    %v200 = vsel %vm93, %v50, 0
    %v203 = vsel %vm93, %v51, 0
    %v206 = vsel %vm93, %v52, 0
    %v209 = vsel %vm93, %v53, 0
    %v212 = vsel %vm93, %v54, 0
    %v215 = vsel %vm93, %v55, 0
    %v218 = vsel %vm93, %v56, 0
    %v221 = vsel %vm93, %v57, 0
    %v224 = vsel %vm93, %v58, 0
    %v227 = vsel %vm93, %v59, 0
    %v230 = vsel %vm93, %v60, 0
    %v233 = vsel %vm93, %v61, 0
    %v236 = vsel %vm93, %v62, 0
    %v239 = vsel %vm93, %v63, 0
    %v242 = vsel %vm93, %v64, 0
    %v245 = vsel %vm93, %v65, 0
    %v248 = vsel %vm93, %v66, 0
    %v251 = vsel %vm93, %v67, 0
    %v254 = vsel %vm93, %v68, 0
    %v257 = vsel %vm93, %v69, 0
    %v260 = vsel %vm93, %v70, 0
    %v263 = vsel %vm93, %v71, 0
    %v266 = vsel %vm93, %v72, 0
    %v269 = vsel %vm93, %v73, 0
    %v272 = vsel %vm93, %v74, 0
    %v275 = vsel %vm93, %v75, 0
    %v278 = vsel %vm93, %v76, 0
    %v281 = vsel %vm93, %v77, 0
    %v284 = vsel %vm93, %v78, 0
    %v287 = vsel %vm93, %v79, 0
    %v290 = vsel %vm93, %v80, 0
    %292 = vmatprep.subr.mxu0 0.0
    %293 = vmatpush1.xpose.msra.mxu0 %v146
    %294 = vmatprep.subr.mxu0 0.0
    %295 = vmatpush1.xpose.msra.mxu0 %v143
    %296 = vmatprep.subr.mxu0 0.0
    %297 = vmatpush1.xpose.msra.mxu0 %v140
    %298 = vmatprep.subr.mxu0 0.0
    %299 = vmatpush1.xpose.msra.mxu0 %v137
    %300 = vmatprep.subr.mxu0 0.0
    %301 = vmatpush1.xpose.msra.mxu0 %v134
    %302 = vmatprep.subr.mxu0 0.0
    %303 = vmatpush1.xpose.msra.mxu0 %v131
    %304 = vmatprep.subr.mxu0 0.0
    %305 = vmatpush1.xpose.msra.mxu0 %v128
    %306 = vmatprep.subr.mxu0 0.0
    %307 = vmatpush1.xpose.msra.mxu0 %v125
    %308 = vmatprep.subr.mxu0 0.0
    %309 = vmatpush1.xpose.msra.mxu0 %v122
    %310 = vmatprep.subr.mxu0 0.0
    %311 = vmatpush1.xpose.msra.mxu0 %v119
    %312 = vmatprep.subr.mxu0 0.0
    %313 = vmatpush1.xpose.msra.mxu0 %v116
    %314 = vmatprep.subr.mxu0 0.0
    %315 = vmatpush1.xpose.msra.mxu0 %v113
    %316 = vmatprep.subr.mxu0 0.0
    %317 = vmatpush1.xpose.msra.mxu0 %v110
    %318 = vmatprep.subr.mxu0 0.0
    %319 = vmatpush1.xpose.msra.mxu0 %v107
    %320 = vmatprep.subr.mxu0 0.0
    %321 = vmatpush1.xpose.msra.mxu0 %v104
    %322 = vmatprep.subr.mxu0 0.0
    %323 = vmatpush1.xpose.msra.mxu0 %v101
    %324 = vmatprep.subr.mxu0 0.0
    %325 = vmatpush2.xpose.msra.mxu0 %v194
    %326 = vmatprep.subr.mxu0 0.0
    %327 = vmatpush2.xpose.msra.mxu0 %v191
    %328 = vmatprep.subr.mxu0 0.0
    %329 = vmatpush2.xpose.msra.mxu0 %v188
    %330 = vmatprep.subr.mxu0 0.0
    %331 = vmatpush2.xpose.msra.mxu0 %v185
    %332 = vmatprep.subr.mxu0 0.0
    %333 = vmatpush2.xpose.msra.mxu0 %v182
    %334 = vmatprep.subr.mxu0 0.0
    %335 = vmatpush2.xpose.msra.mxu0 %v179
    %336 = vmatprep.subr.mxu0 0.0
    %337 = vmatpush2.xpose.msra.mxu0 %v176
    %338 = vmatprep.subr.mxu0 0.0
    %339 = vmatpush2.xpose.msra.mxu0 %v173
    %340 = vmatprep.subr.mxu0 0.0
    %341 = vmatpush2.xpose.msra.mxu0 %v170
    %342 = vmatprep.subr.mxu0 0.0
    %343 = vmatpush2.xpose.msra.mxu0 %v167
    %344 = vmatprep.subr.mxu0 0.0
    %345 = vmatpush2.xpose.msra.mxu0 %v164
    %346 = vmatprep.subr.mxu0 0.0
    %347 = vmatpush2.xpose.msra.mxu0 %v161
    %348 = vmatprep.subr.mxu0 0.0
    %349 = vmatpush2.xpose.msra.mxu0 %v158
    %350 = vmatprep.subr.mxu0 0.0
    %351 = vmatpush2.xpose.msra.mxu0 %v155
    %352 = vmatprep.subr.mxu0 0.0
    %353 = vmatpush2.xpose.msra.mxu0 %v152
    %354 = vmatprep.subr.mxu0 0.0
    %355 = vmatpush2.xpose.msra.mxu0 %v149
    %356 = vmatprep.mubr.f32.mxu0 0.0
    %357 = vmatmul.mubr.f32.gmra.mxu0 %v95
    %v358 = vpop.f32.mrf.mxu0
    %v359 = vadd.f32 %v86, %v358
    %v360 = vpop.f32.mrf.mxu0
    %v361 = vadd.f32 %v86, %v360
    %362 = vmatprep.mubr.f32.mxu0 0.0
    %363 = vmatmul.mubr.f32.gmra.mxu0 %v98
    %v364 = vpop.f32.mrf.mxu0
    %v365 = vadd.f32 %v91, %v364
    %v366 = vpop.f32.mrf.mxu0
    %v367 = vadd.f32 %v91, %v366
    %368 = vdwg.mxu0
    %369 = vmatprep.subr.mxu0 0.0
    %370 = vmatpush1.xpose.msra.mxu0 %v242
    %371 = vmatprep.subr.mxu0 0.0
    %372 = vmatpush1.xpose.msra.mxu0 %v239
    %373 = vmatprep.subr.mxu0 0.0
    %374 = vmatpush1.xpose.msra.mxu0 %v236
    %375 = vmatprep.subr.mxu0 0.0
    %376 = vmatpush1.xpose.msra.mxu0 %v233
    %377 = vmatprep.subr.mxu0 0.0
    %378 = vmatpush1.xpose.msra.mxu0 %v230
    %379 = vmatprep.subr.mxu0 0.0
    %380 = vmatpush1.xpose.msra.mxu0 %v227
    %381 = vmatprep.subr.mxu0 0.0
    %382 = vmatpush1.xpose.msra.mxu0 %v224
    %383 = vmatprep.subr.mxu0 0.0
    %384 = vmatpush1.xpose.msra.mxu0 %v221
    %385 = vmatprep.subr.mxu0 0.0
    %386 = vmatpush1.xpose.msra.mxu0 %v218
    %387 = vmatprep.subr.mxu0 0.0
    %388 = vmatpush1.xpose.msra.mxu0 %v215
    %389 = vmatprep.subr.mxu0 0.0
    %390 = vmatpush1.xpose.msra.mxu0 %v212
    %391 = vmatprep.subr.mxu0 0.0
    %392 = vmatpush1.xpose.msra.mxu0 %v209
    %393 = vmatprep.subr.mxu0 0.0
    %394 = vmatpush1.xpose.msra.mxu0 %v206
    %395 = vmatprep.subr.mxu0 0.0
    %396 = vmatpush1.xpose.msra.mxu0 %v203
    %397 = vmatprep.subr.mxu0 0.0
    %398 = vmatpush1.xpose.msra.mxu0 %v200
    %399 = vmatprep.subr.mxu0 0.0
    %400 = vmatpush1.xpose.msra.mxu0 %v197
    %401 = vmatprep.subr.mxu0 0.0
    %402 = vmatpush2.xpose.msra.mxu0 %v290
    %403 = vmatprep.subr.mxu0 0.0
    %404 = vmatpush2.xpose.msra.mxu0 %v287
    %405 = vmatprep.subr.mxu0 0.0
    %406 = vmatpush2.xpose.msra.mxu0 %v284
    %407 = vmatprep.subr.mxu0 0.0
    %408 = vmatpush2.xpose.msra.mxu0 %v281
    %409 = vmatprep.subr.mxu0 0.0
    %410 = vmatpush2.xpose.msra.mxu0 %v278
    %411 = vmatprep.subr.mxu0 0.0
    %412 = vmatpush2.xpose.msra.mxu0 %v275
    %413 = vmatprep.subr.mxu0 0.0
    %414 = vmatpush2.xpose.msra.mxu0 %v272
    %415 = vmatprep.subr.mxu0 0.0
    %416 = vmatpush2.xpose.msra.mxu0 %v269
    %417 = vmatprep.subr.mxu0 0.0
    %418 = vmatpush2.xpose.msra.mxu0 %v266
    %419 = vmatprep.subr.mxu0 0.0
    %420 = vmatpush2.xpose.msra.mxu0 %v263
    %421 = vmatprep.subr.mxu0 0.0
    %422 = vmatpush2.xpose.msra.mxu0 %v260
    %423 = vmatprep.subr.mxu0 0.0
    %424 = vmatpush2.xpose.msra.mxu0 %v257
    %425 = vmatprep.subr.mxu0 0.0
    %426 = vmatpush2.xpose.msra.mxu0 %v254
    %427 = vmatprep.subr.mxu0 0.0
    %428 = vmatpush2.xpose.msra.mxu0 %v251
    %429 = vmatprep.subr.mxu0 0.0
    %430 = vmatpush2.xpose.msra.mxu0 %v248
    %431 = vmatprep.subr.mxu0 0.0
    %432 = vmatpush2.xpose.msra.mxu0 %v245
    %433 = vmatprep.mubr.f32.mxu0 0.0
    %434 = vmatmul.mubr.f32.gmra.mxu0 %v95
    %v435 = vpop.f32.mrf.mxu0
    %v436 = vadd.f32 %v86, %v435
    %v437 = vpop.f32.mrf.mxu0
    %v438 = vadd.f32 %v86, %v437
    %439 = vmatprep.mubr.f32.mxu0 0.0
    %440 = vmatmul.mubr.f32.gmra.mxu0 %v98
    %v441 = vpop.f32.mrf.mxu0
    %v442 = vadd.f32 %v91, %v441
    %v443 = vpop.f32.mrf.mxu0
    %v444 = vadd.f32 %v91, %v443
    %445 = vdwg.mxu0
    %v446 = vmin.f32 %v359, %v365
    %v447 = vrot.slane %v446, 4
    %v448 = vmin.f32 %v446, %v447
    %v449 = vrot.slane %v448, 2
    %v450 = vmin.f32 %v448, %v449
    %v451 = vrot.slane %v450, 1
    %v452 = vmin.f32 %v450, %v451
    %v453 = vmin.f32 %v361, %v367
    %v454 = vrot.slane %v453, 4
    %v455 = vmin.f32 %v453, %v454
    %v456 = vrot.slane %v455, 2
    %v457 = vmin.f32 %v455, %v456
    %v458 = vrot.slane %v457, 1
    %v459 = vmin.f32 %v457, %v458
    %v460 = vmin.f32 %v436, %v442
    %v461 = vrot.slane %v460, 4
    %v462 = vmin.f32 %v460, %v461
    %v463 = vrot.slane %v462, 2
    %v464 = vmin.f32 %v462, %v463
    %v465 = vrot.slane %v464, 1
    %v466 = vmin.f32 %v464, %v465
    %v467 = vmin.f32 %v438, %v444
    %v468 = vrot.slane %v467, 4
    %v469 = vmin.f32 %v467, %v468
    %v470 = vrot.slane %v469, 2
    %v471 = vmin.f32 %v469, %v470
    %v472 = vrot.slane %v471, 1
    %v473 = vmin.f32 %v471, %v472
    %v474 = vsub.f32 %v359, %v452
    %v475 = vsub.f32 %v361, %v459
    %v476 = vsub.f32 %v436, %v466
    %v477 = vsub.f32 %v438, %v473
    %v478 = vsub.f32 %v365, %v452
    %v479 = vsub.f32 %v367, %v459
    %v480 = vsub.f32 %v442, %v466
    %v481 = vsub.f32 %v444, %v473
    %v482 = vmul.f32 %v474, %v474
    %v483 = vmul.f32 %v475, %v475
    %v484 = vmul.f32 %v476, %v476
    %v485 = vmul.f32 %v477, %v477
    %v486 = vmul.f32 %v478, %v478
    %v487 = vmul.f32 %v479, %v479
    %v488 = vmul.f32 %v480, %v480
    %v489 = vmul.f32 %v481, %v481
    %v490 = vadd.f32 %v482, %v486
    %v491 = vrot.slane %v490, 4
    %v492 = vadd.f32 %v490, %v491
    %v493 = vrot.slane %v492, 2
    %v494 = vadd.f32 %v492, %v493
    %v495 = vrot.slane %v494, 1
    %v496 = vadd.f32 %v494, %v495
    %v497 = vadd.f32 %v483, %v487
    %v498 = vrot.slane %v497, 4
    %v499 = vadd.f32 %v497, %v498
    %v500 = vrot.slane %v499, 2
    %v501 = vadd.f32 %v499, %v500
    %v502 = vrot.slane %v501, 1
    %v503 = vadd.f32 %v501, %v502
    %v504 = vadd.f32 %v484, %v488
    %v505 = vrot.slane %v504, 4
    %v506 = vadd.f32 %v504, %v505
    %v507 = vrot.slane %v506, 2
    %v508 = vadd.f32 %v506, %v507
    %v509 = vrot.slane %v508, 1
    %v510 = vadd.f32 %v508, %v509
    %v511 = vadd.f32 %v485, %v489
    %v512 = vrot.slane %v511, 4
    %v513 = vadd.f32 %v511, %v512
    %v514 = vrot.slane %v513, 2
    %v515 = vadd.f32 %v513, %v514
    %v516 = vrot.slane %v515, 1
    %v517 = vadd.f32 %v515, %v516
    %v518 = vmax.f32 %v496, 1e-24
    %v519 = vmax.f32 %v503, 1e-24
    %v520 = vmax.f32 %v510, 1e-24
    %v521 = vmax.f32 %v517, 1e-24
    %v522 = vrsqrt.pop %v518
    %v523 = vrsqrt.pop %v519
    %v524 = vrsqrt.pop %v520
    %v525 = vrsqrt.pop %v521
    %v526 = vmul.f32 %v474, %v522
    %v527 = vmul.f32 %v475, %v523
    %v528 = vmul.f32 %v476, %v524
    %v529 = vmul.f32 %v477, %v525
    %v530 = vmul.f32 %v478, %v522
    %v531 = vmul.f32 %v479, %v523
    %v532 = vmul.f32 %v480, %v524
    %v533 = vmul.f32 %v481, %v525
    %534 = vst [vmem:[#allocation2] sm:$0xff] %v526
    %535 = vst [vmem:[#allocation2 + $0x8] sm:$0xff] %v527
    %536 = vst [vmem:[#allocation2 + $0x10] sm:$0xff] %v528
    %537 = vst [vmem:[#allocation2 + $0x18] sm:$0xff] %v529
    %538 = vst [vmem:[#allocation2 + $0x20] sm:$0xff] %v530
    %539 = vst [vmem:[#allocation2 + $0x28] sm:$0xff] %v531
    %540 = vst [vmem:[#allocation2 + $0x30] sm:$0xff] %v532
    %541 = vst [vmem:[#allocation2 + $0x38] sm:$0xff] %v533
    // Predicated region
    $region14: #{tpu_custom_call.1} parent=1 // pred_check
      _
    $region15: #{tpu_custom_call.1} parent=1 // pred_check_branch
      %543 = sbr.rel (0) target = $region17
    $region16: #{tpu_custom_call.1} parent=1 // pred_region
      %s545 = ssub.s32 1024, 1024
      %546 = vsyncadd [#allocation3], %s545
      %s547 = sshll.u32 [#allocation2], 4
      %s548 = int_to_ptr.vmem [resolvable:$true] %s547
      %553 = dma.vmem_to_hbm [thread:$0]  %s548, 1024, %s3, [#allocation3], 512, 512, 32
    $region17: #{tpu_custom_call.1} parent=1 // pred_fallthru
      _
    // Predicated region
    $region18: #{tpu_custom_call.1} parent=1 // pred_check
      _
    $region19: #{tpu_custom_call.1} parent=1 // pred_check_branch
      %555 = sbr.rel (0) target = $region21
    $region20: #{tpu_custom_call.1} parent=1 // pred_region
      %556 = dma.done [#allocation3], 1024
    $region21: #{tpu_custom_call.1} parent=1 // pred_fallthru
      _
    %557 = vsyncpa [#allocation3], 1

</llo_original>
